<compile_context>
chip_gen: v7x
topology: tpu7x:2x2x1
jax: 0.10.0
libtpu: 0.0.40
codegen_flags: <defaults>
</compile_context>

<pallas_src>
import math
from functools import partial

import numpy as np
import jax
import jax.numpy as jnp
from jax import lax
from jax.experimental import pallas as pl
from jax.experimental.pallas import tpu as pltpu

LANE = 128              # vreg lane width (last block dim)
SUB = 8                 # sublane granularity: row counts must be multiples of 8
MAX_BLOCK_ROWS = 4096   # (2, 4096, 128) f32 block = 4 MiB; 16 MiB VMEM double-buffered
TWO_CORE_BYTES = 2 << 20  # above this slab size, force >=2 grid steps (v7x megacore)

# Flipped to False at runtime if this backend rejects input fusion for this
# producer pattern; purely a graceful degradation of an optional compiler hint.
_ALLOW_INPUT_FUSION = True


def _round_up(a: int, b: int) -> int:
    return ((a + b - 1) // b) * b


def _complex_math(re, im, method):
    """Elementwise activation math on separate (re, im) float32 planes."""
    if method == "real":
        # 1[z.real >= 0] * z
        mask = re >= 0.0
        return jnp.where(mask, re, 0.0), jnp.where(mask, im, 0.0)
    if method == "real_imag":
        # ReLU(z.real) + i*ReLU(z.imag)
        return jnp.maximum(re, 0.0), jnp.maximum(im, 0.0)
    if method == "arg_bdd":
        # z if -pi/2 <= atan2(im, re) < pi/2 else 0.  Algebraically equivalent
        # mask (no atan2 needed):  re > 0, or (re == 0 and im <= 0).
        cond = (re > 0.0) | ((re == 0.0) & (im <= 0.0))
        return jnp.where(cond, re, 0.0), jnp.where(cond, im, 0.0)
    if method == "phase_amp":
        # tanh(|z|) * exp(i*arg(z)) = (tanh(r)/r) * z, with 0 at r == 0.
        # rsqrt formulation: 2 EUP ops (rsqrt, tanh) instead of 3 (sqrt, div, tanh).
        # Note: re*re + im*im overflows f32 for |component| >~ 1.8e19 and flushes
        # |z| <~ 1e-19 to 0; fine for neural-net activation magnitudes.
        s = re * re + im * im
        inv_r = lax.rsqrt(jnp.where(s > 0.0, s, 1.0))
        r = s * inv_r                      # == sqrt(s)
        scale = jnp.where(s > 0.0, jnp.tanh(r) * inv_r, 0.0)
        return scale * re, scale * im
    raise ValueError(f"unknown method: {method}")


def _complex_act_kernel(x_ref, o_ref, *, method):
    # Block: (2, block_rows, LANE) float32.  Plane 0 = real, plane 1 = imag.
    re_out, im_out = _complex_math(x_ref[0], x_ref[1], method)
    o_ref[0] = re_out
    o_ref[1] = im_out


@partial(jax.jit, static_argnames=("method",))
def _jnp_impl(x, method):
    """Single-pass fused-XLA path for inputs that fit in one kernel block."""
    re = jnp.real(x).astype(jnp.float32)
    im = jnp.imag(x).astype(jnp.float32)
    ro, io = _complex_math(re, im, method)
    return lax.complex(ro, io)


@partial(jax.jit, static_argnames=("method", "allow_fusion"))
def _pallas_impl(x, method, allow_fusion):
    orig_shape = x.shape
    n = math.prod(orig_shape) if orig_shape else 1

    # NOTE: complex128 inputs are computed in float32 (complex64 output).
    re = jnp.real(x).astype(jnp.float32).reshape(-1)
    im = jnp.imag(x).astype(jnp.float32).reshape(-1)

    # Lane-dense layout: rows of 128 f32, balanced blocks (padding < 8 rows/block).
    rows = pl.cdiv(n, LANE)
    nblocks = pl.cdiv(rows, MAX_BLOCK_ROWS)
    if rows * LANE * 8 > TWO_CORE_BYTES:       # slab bytes (both planes) > 2 MiB
        nblocks = max(nblocks, 2)              # let v7x shard across both TCs
    block_rows = _round_up(pl.cdiv(rows, nblocks), SUB)
    padded_rows = nblocks * block_rows

    pad = padded_rows * LANE - n
    if pad:
        re = jnp.pad(re, (0, pad))
        im = jnp.pad(im, (0, pad))
    # Single stacked slab -> one input stream / one output stream in the kernel.
    # With allow_fusion this producer fuses into the kernel input and is never
    # materialized in HBM.
    slab = jnp.stack(
        [re.reshape(padded_rows, LANE), im.reshape(padded_rows, LANE)], axis=0
    )

    spec = pl.BlockSpec((2, block_rows, LANE), lambda i: (0, i, 0))

    out = pl.pallas_call(
        partial(_complex_act_kernel, method=method),
        out_shape=jax.ShapeDtypeStruct((2, padded_rows, LANE), jnp.float32),
        grid=(nblocks,),
        in_specs=[spec],
        out_specs=spec,
        # A fused producer cannot be aliased; keep the alias only on the
        # non-fused path (saves an HBM allocation there).
        input_output_aliases={} if allow_fusion else {0: 0},
        compiler_params=pltpu.CompilerParams(
            dimension_semantics=("parallel",),
            vmem_limit_bytes=32 * 1024 * 1024,
            allow_input_fusion=[True] if allow_fusion else None,
        ),
    )(slab)

    ore = out[0].reshape(-1)
    oim = out[1].reshape(-1)
    if pad:
        ore = ore[:n]
        oim = oim[:n]
    return lax.complex(ore.reshape(orig_shape), oim.reshape(orig_shape))


def complex_activation(x, method: str = "arg_bdd", use_pallas=None):
    """Pallas TPU implementation of ComplexActivation.forward for complex input x.

    use_pallas=None  -> auto: skip Pallas for inputs that fit in one block.
    use_pallas=True  -> always run the Pallas kernel (used by the demo/tests).
    """
    global _ALLOW_INPUT_FUSION
    n = int(x.size) if x.size else 1
    rows = pl.cdiv(n, LANE)
    if use_pallas is None:
        use_pallas = rows > MAX_BLOCK_ROWS
    if not use_pallas:
        return _jnp_impl(x, method)
    if _ALLOW_INPUT_FUSION:
        try:
            return _pallas_impl(x, method, True)
        except Exception:
            # This backend rejected the input-fusion hint for this producer;
            # fall back (same kernel, explicit slab materialization).
            _ALLOW_INPUT_FUSION = False
    return _pallas_impl(x, method, False)


def _numpy_reference(x_np, method):
    if method == "real":
        return x_np * (x_np.real >= 0)
    if method == "real_imag":
        return np.maximum(x_np.real, 0.0) + 1j * np.maximum(x_np.imag, 0.0)
    if method == "arg_bdd":
        ang = np.angle(x_np)
        return np.where((-np.pi / 2 <= ang) & (ang < np.pi / 2), x_np, 0)
    if method == "phase_amp":
        return np.tanh(np.abs(x_np)) * np.exp(1j * np.angle(x_np))
    raise ValueError(method)


if __name__ == "__main__":
    key = jax.random.PRNGKey(0)
    k_re, k_im = jax.random.split(key)
    shape = (2, 4, 16, 16)  # NCHW, a typical complex activation map
    x_re = jax.random.normal(k_re, shape, dtype=jnp.float32)
    x_im = jax.random.normal(k_im, shape, dtype=jnp.float32)
    x = jax.lax.complex(x_re, x_im)  # complex64
    x_np = np.asarray(x_re) + 1j * np.asarray(x_im)

    for method in ("real", "real_imag", "arg_bdd", "phase_amp"):
        # Force the Pallas path so the kernel is exercised at this small size.
        out = jax.block_until_ready(complex_activation(x, method=method, use_pallas=True))
        ref = _numpy_reference(x_np, method).astype(np.complex64)
        np.testing.assert_allclose(np.asarray(out), ref, rtol=2e-5, atol=2e-5)

    # Auto path (small input -> fused jnp fast path), same semantics.
    out_fast = jax.block_until_ready(complex_activation(x, method="arg_bdd"))
    np.testing.assert_allclose(
        np.asarray(out_fast),
        _numpy_reference(x_np, "arg_bdd").astype(np.complex64),
        rtol=2e-5, atol=2e-5,
    )

    # Non-lane-aligned shape through the Pallas path to exercise padding.
    k2r, k2i = jax.random.split(jax.random.PRNGKey(1))
    shape2 = (3, 5, 7)
    y_re = jax.random.normal(k2r, shape2, dtype=jnp.float32)
    y_im = jax.random.normal(k2i, shape2, dtype=jnp.float32)
    y = jax.lax.complex(y_re, y_im)
    y_np = np.asarray(y_re) + 1j * np.asarray(y_im)
    out2 = jax.block_until_ready(complex_activation(y, method="phase_amp", use_pallas=True))
    np.testing.assert_allclose(
        np.asarray(out2),
        _numpy_reference(y_np, "phase_amp").astype(np.complex64),
        rtol=2e-5, atol=2e-5,
    )

    print("KERNEL_OK")
</pallas_src>

<mosaic_0001>
module attributes {stable_mosaic.version = 11 : i64} {
  func.func @_complex_act_kernel(%arg0: i32, %arg1: memref<2x16x128xf32, #tpu.memory_space<vmem>>, %arg2: memref<2x16x128xf32, #tpu.memory_space<vmem>>) attributes {dimension_semantics = [#tpu.dimension_semantics<parallel>], iteration_bounds = array<i64: 1>, scalar_prefetch = 0 : i64, scratch_operands = 0 : i64, tpu.core_type = #tpu.core_type<tc>, window_params = [{transform_indices = @transform_0, window_bounds = array<i64: 2, 16, 128>}, {transform_indices = @transform_1, window_bounds = array<i64: 2, 16, 128>}]} {
    %c0 = arith.constant 0 : index
    %c0_0 = arith.constant 0 : index
    %c0_1 = arith.constant 0 : index
    %0 = vector.load %arg1[%c0, %c0_0, %c0_1] : memref<2x16x128xf32, #tpu.memory_space<vmem>>, vector<1x16x128xf32>
    %1 = vector.shape_cast %0 : vector<1x16x128xf32> to vector<16x128xf32>
    %c1 = arith.constant 1 : index
    %c0_2 = arith.constant 0 : index
    %c0_3 = arith.constant 0 : index
    %2 = vector.load %arg1[%c1, %c0_2, %c0_3] : memref<2x16x128xf32, #tpu.memory_space<vmem>>, vector<1x16x128xf32>
    %3 = vector.shape_cast %2 : vector<1x16x128xf32> to vector<16x128xf32>
    %cst = arith.constant 0.000000e+00 : f32
    %4 = vector.broadcast %cst : f32 to vector<16x128xf32>
    %5 = arith.cmpf oge, %1, %4 : vector<16x128xf32>
    %cst_4 = arith.constant 0.000000e+00 : f32
    %6 = vector.broadcast %cst_4 : f32 to vector<16x128xf32>
    %7 = arith.select %5, %1, %6 : vector<16x128xi1>, vector<16x128xf32>
    %cst_5 = arith.constant 0.000000e+00 : f32
    %8 = vector.broadcast %cst_5 : f32 to vector<16x128xf32>
    %9 = arith.select %5, %3, %8 : vector<16x128xi1>, vector<16x128xf32>
    %c0_6 = arith.constant 0 : index
    %c0_7 = arith.constant 0 : index
    %c0_8 = arith.constant 0 : index
    %10 = vector.load %arg2[%c0_6, %c0_7, %c0_8] : memref<2x16x128xf32, #tpu.memory_space<vmem>>, vector<1x16x128xf32>
    %11 = vector.shape_cast %10 : vector<1x16x128xf32> to vector<16x128xf32>
    %12 = vector.shape_cast %7 : vector<16x128xf32> to vector<1x16x128xf32>
    tpu.vector_store %arg2[%c0_6, %c0_7, %c0_8], %12 {strides = array<i32>} : memref<2x16x128xf32, #tpu.memory_space<vmem>>, vector<1x16x128xf32>,
    %c1_9 = arith.constant 1 : index
    %c0_10 = arith.constant 0 : index
    %c0_11 = arith.constant 0 : index
    %13 = vector.load %arg2[%c1_9, %c0_10, %c0_11] : memref<2x16x128xf32, #tpu.memory_space<vmem>>, vector<1x16x128xf32>
    %14 = vector.shape_cast %13 : vector<1x16x128xf32> to vector<16x128xf32>
    %15 = vector.shape_cast %9 : vector<16x128xf32> to vector<1x16x128xf32>
    tpu.vector_store %arg2[%c1_9, %c0_10, %c0_11], %15 {strides = array<i32>} : memref<2x16x128xf32, #tpu.memory_space<vmem>>, vector<1x16x128xf32>,
    return
  }
  func.func @transform_0(%arg0: i32) -> (i32, i32, i32) {
    %c0_i32 = arith.constant 0 : i32
    %c0_i32_0 = arith.constant 0 : i32
    %c0_i32_1 = arith.constant 0 : i32
    return %c0_i32, %arg0, %c0_i32_0 : i32, i32, i32
  }
  func.func @transform_1(%arg0: i32) -> (i32, i32, i32) {
    %c0_i32 = arith.constant 0 : i32
    %c0_i32_0 = arith.constant 0 : i32
    %c0_i32_1 = arith.constant 0 : i32
    return %c0_i32, %arg0, %c0_i32_0 : i32, i32, i32
  }
}

module attributes {stable_mosaic.version = 11 : i64} {
  func.func @_complex_act_kernel(%arg0: i32, %arg1: memref<2x16x128xf32, #tpu.memory_space<vmem>>, %arg2: memref<2x16x128xf32, #tpu.memory_space<vmem>>) attributes {dimension_semantics = [#tpu.dimension_semantics<parallel>], iteration_bounds = array<i64: 1>, scalar_prefetch = 0 : i64, scratch_operands = 0 : i64, tpu.core_type = #tpu.core_type<tc>, window_params = [{transform_indices = @transform_0, window_bounds = array<i64: 2, 16, 128>}, {transform_indices = @transform_1, window_bounds = array<i64: 2, 16, 128>}]} {
    %c0 = arith.constant 0 : index
    %c0_0 = arith.constant 0 : index
    %c0_1 = arith.constant 0 : index
    %0 = vector.load %arg1[%c0, %c0_0, %c0_1] : memref<2x16x128xf32, #tpu.memory_space<vmem>>, vector<1x16x128xf32>
    %1 = vector.shape_cast %0 : vector<1x16x128xf32> to vector<16x128xf32>
    %c1 = arith.constant 1 : index
    %c0_2 = arith.constant 0 : index
    %c0_3 = arith.constant 0 : index
    %2 = vector.load %arg1[%c1, %c0_2, %c0_3] : memref<2x16x128xf32, #tpu.memory_space<vmem>>, vector<1x16x128xf32>
    %3 = vector.shape_cast %2 : vector<1x16x128xf32> to vector<16x128xf32>
    %cst = arith.constant 0.000000e+00 : f32
    %4 = vector.broadcast %cst : f32 to vector<16x128xf32>
    %5 = arith.cmpf oge, %1, %4 : vector<16x128xf32>
    %cst_4 = arith.constant 0.000000e+00 : f32
    %6 = vector.broadcast %cst_4 : f32 to vector<16x128xf32>
    %7 = arith.select %5, %1, %6 : vector<16x128xi1>, vector<16x128xf32>
    %cst_5 = arith.constant 0.000000e+00 : f32
    %8 = vector.broadcast %cst_5 : f32 to vector<16x128xf32>
    %9 = arith.select %5, %3, %8 : vector<16x128xi1>, vector<16x128xf32>
    %c0_6 = arith.constant 0 : index
    %c0_7 = arith.constant 0 : index
    %c0_8 = arith.constant 0 : index
    %10 = vector.load %arg2[%c0_6, %c0_7, %c0_8] : memref<2x16x128xf32, #tpu.memory_space<vmem>>, vector<1x16x128xf32>
    %11 = vector.shape_cast %10 : vector<1x16x128xf32> to vector<16x128xf32>
    %12 = vector.shape_cast %7 : vector<16x128xf32> to vector<1x16x128xf32>
    tpu.vector_store %arg2[%c0_6, %c0_7, %c0_8], %12 {strides = array<i32>} : memref<2x16x128xf32, #tpu.memory_space<vmem>>, vector<1x16x128xf32>,
    %c1_9 = arith.constant 1 : index
    %c0_10 = arith.constant 0 : index
    %c0_11 = arith.constant 0 : index
    %13 = vector.load %arg2[%c1_9, %c0_10, %c0_11] : memref<2x16x128xf32, #tpu.memory_space<vmem>>, vector<1x16x128xf32>
    %14 = vector.shape_cast %13 : vector<1x16x128xf32> to vector<16x128xf32>
    %15 = vector.shape_cast %9 : vector<16x128xf32> to vector<1x16x128xf32>
    tpu.vector_store %arg2[%c1_9, %c0_10, %c0_11], %15 {strides = array<i32>} : memref<2x16x128xf32, #tpu.memory_space<vmem>>, vector<1x16x128xf32>,
    return
  }
  func.func @transform_0(%arg0: i32) -> (i32, i32, i32) {
    %c0_i32 = arith.constant 0 : i32
    %c0_i32_0 = arith.constant 0 : i32
    %c0_i32_1 = arith.constant 0 : i32
    return %c0_i32, %arg0, %c0_i32_0 : i32, i32, i32
  }
  func.func @transform_1(%arg0: i32) -> (i32, i32, i32) {
    %c0_i32 = arith.constant 0 : i32
    %c0_i32_0 = arith.constant 0 : i32
    %c0_i32_1 = arith.constant 0 : i32
    return %c0_i32, %arg0, %c0_i32_0 : i32, i32, i32
  }
}

</mosaic_0001>

<llo_original>
// kernel: custom-call.1
$region0: #{custom-call.1}
  %s0 = inlined_call_operand.hbm [shape: c64[2,4,16,16], index: 0, kind: input, shape index: {}]
  %s1 = inlined_call_operand.vmem [shape: f32[2,4,16,16], index: 1, kind: output, shape index: {}]
  %s2 = scalar_lea.hbm %s0, 2048
  $region1: #{custom-call.1} parent=0
    #allocation0 [shape = 's32[1]{0}', space=sflag, size = 0x4, scoped, tag = 'scoped memory for custom-call.1']
    %3 = vsyncpa [#allocation0], 0
    %s4 = sshll.u32 %s1, 4
    %s5 = int_to_ptr.vmem [resolvable:$true] %s4
    %7 = dma.hbm_to_vmem [thread:$0]  %s2, 2048, %s5, [#allocation0]
    %8 = dma.done [#allocation0], 2048
    %9 = vsyncpa [#allocation0], 1

// kernel: custom-call
$region0: #{custom-call}
  %s0 = inlined_call_operand.hbm [shape: c64[2,4,16,16], index: 0, kind: input, shape index: {}]
  %s1 = inlined_call_operand.vmem [shape: f32[2,4,16,16], index: 1, kind: output, shape index: {}]
  $region1: #{custom-call} parent=0
    #allocation0 [shape = 's32[1]{0}', space=sflag, size = 0x4, scoped, tag = 'scoped memory for custom-call']
    %2 = vsyncpa [#allocation0], 0
    %s3 = sshll.u32 %s1, 4
    %s4 = int_to_ptr.vmem [resolvable:$true] %s3
    %6 = dma.hbm_to_vmem [thread:$0]  %s0, 2048, %s4, [#allocation0]
    %7 = dma.done [#allocation0], 2048
    %8 = vsyncpa [#allocation0], 1

// kernel: custom-call.2
$region0: #{custom-call.2}
  %s0 = inlined_call_operand.vmem [shape: f32[2,4,16,16], index: 0, kind: input, shape index: {}]
  %s1 = inlined_call_operand.vmem [shape: f32[2,4,16,16], index: 1, kind: input, shape index: {}]
  %s2 = inlined_call_operand.hbm [shape: c64[2,4,16,16], index: 2, kind: output, shape index: {}]
  %s3 = scalar_lea.hbm %s2, 2048
  $region1: #{custom-call.2} parent=0
    #allocation0 [shape = 's32[1]{0}', space=sflag, size = 0x4, scoped, tag = 'scoped memory for custom-call.2']
    %4 = vsyncpa [#allocation0], 0
    %s5 = sshll.u32 %s0, 4
    %s6 = int_to_ptr.vmem [resolvable:$true] %s5
    %8 = dma.vmem_to_hbm [thread:$0]  %s6, 2048, %s2, [#allocation0]
    %9 = dma.done [#allocation0], 2048
    %10 = vsyncpa [#allocation0], 1
  $region2: #{custom-call.2} parent=0
    #allocation1 [shape = 's32[1]{0}', space=sflag, size = 0x4, scoped, tag = 'scoped memory for custom-call.2']
    %11 = vsyncpa [#allocation1], 0
    %s12 = sshll.u32 %s1, 4
    %s13 = int_to_ptr.vmem [resolvable:$true] %s12
    %15 = dma.vmem_to_hbm [thread:$0]  %s13, 2048, %s3, [#allocation1]
    %16 = dma.done [#allocation1], 2048
    %17 = vsyncpa [#allocation1], 1

// kernel: squeeze.3
$region0: #{squeeze.3}
  %s0 = inlined_call_operand.vmem [shape: f32[1,16,128], index: 0, kind: input, shape index: {}]
  %s1 = inlined_call_operand.vmem [shape: f32[2,4,16,16], index: 1, kind: output, shape index: {}]
  %v2 = vld [vmem:[%s0] sm:$0xff]
  %vm3 = vcmask 130048
  %4 = vst.msk [vmem:[%s1] ss:$8 sm:$0xf] %vm3, %v2
  %5 = vst.msk [vmem:[%s1] ss:$8 sm:$0xf0] %vm3, %v2
  %s6 = scalar_lea.vmem %s0, 8
  %v7 = vld [vmem:[%s6] sm:$0xff]
  %vm8 = vcmask 130048
  %s9 = scalar_lea.vmem %s1, 64
  %10 = vst.msk [vmem:[%s9] ss:$8 sm:$0xf] %vm8, %v7
  %s11 = scalar_lea.vmem %s1, 64
  %12 = vst.msk [vmem:[%s11] ss:$8 sm:$0xf0] %vm8, %v7
  %v13 = vld [vmem:[%s0] sm:$0xff]
  %14 = vrot.lane.b32.xlu0 %v13, 112
  %v15 = vpop.permute.xlu0 %14
  %vm16 = vcmask 130048
  %s17 = scalar_lea.vmem %s1, 1
  %18 = vst.msk [vmem:[%s17] ss:$8 sm:$0xf] %vm16, %v15
  %s19 = scalar_lea.vmem %s1, 1
  %20 = vst.msk [vmem:[%s19] ss:$8 sm:$0xf0] %vm16, %v15
  %s21 = scalar_lea.vmem %s0, 8
  %v22 = vld [vmem:[%s21] sm:$0xff]
  %23 = vrot.lane.b32.xlu0 %v22, 112
  %v24 = vpop.permute.xlu0 %23
  %vm25 = vcmask 130048
  %s26 = scalar_lea.vmem %s1, 65
  %27 = vst.msk [vmem:[%s26] ss:$8 sm:$0xf] %vm25, %v24
  %s28 = scalar_lea.vmem %s1, 65
  %29 = vst.msk [vmem:[%s28] ss:$8 sm:$0xf0] %vm25, %v24
  %v30 = vld [vmem:[%s0] sm:$0xff]
  %31 = vrot.lane.b32.xlu0 %v30, 96
  %v32 = vpop.permute.xlu0 %31
  %vm33 = vcmask 130048
  %s34 = scalar_lea.vmem %s1, 2
  %35 = vst.msk [vmem:[%s34] ss:$8 sm:$0xf] %vm33, %v32
  %s36 = scalar_lea.vmem %s1, 2
  %37 = vst.msk [vmem:[%s36] ss:$8 sm:$0xf0] %vm33, %v32
  %s38 = scalar_lea.vmem %s0, 8
  %v39 = vld [vmem:[%s38] sm:$0xff]
  %40 = vrot.lane.b32.xlu0 %v39, 96
  %v41 = vpop.permute.xlu0 %40
  %vm42 = vcmask 130048
  %s43 = scalar_lea.vmem %s1, 66
  %44 = vst.msk [vmem:[%s43] ss:$8 sm:$0xf] %vm42, %v41
  %s45 = scalar_lea.vmem %s1, 66
  %46 = vst.msk [vmem:[%s45] ss:$8 sm:$0xf0] %vm42, %v41
  %v47 = vld [vmem:[%s0] sm:$0xff]
  %48 = vrot.lane.b32.xlu0 %v47, 80
  %v49 = vpop.permute.xlu0 %48
  %vm50 = vcmask 130048
  %s51 = scalar_lea.vmem %s1, 3
  %52 = vst.msk [vmem:[%s51] ss:$8 sm:$0xf] %vm50, %v49
  %s53 = scalar_lea.vmem %s1, 3
  %54 = vst.msk [vmem:[%s53] ss:$8 sm:$0xf0] %vm50, %v49
  %s55 = scalar_lea.vmem %s0, 8
  %v56 = vld [vmem:[%s55] sm:$0xff]
  %57 = vrot.lane.b32.xlu0 %v56, 80
  %v58 = vpop.permute.xlu0 %57
  %vm59 = vcmask 130048
  %s60 = scalar_lea.vmem %s1, 67
  %61 = vst.msk [vmem:[%s60] ss:$8 sm:$0xf] %vm59, %v58
  %s62 = scalar_lea.vmem %s1, 67
  %63 = vst.msk [vmem:[%s62] ss:$8 sm:$0xf0] %vm59, %v58
  %v64 = vld [vmem:[%s0] sm:$0xff]
  %65 = vrot.lane.b32.xlu0 %v64, 64
  %v66 = vpop.permute.xlu0 %65
  %vm67 = vcmask 130048
  %s68 = scalar_lea.vmem %s1, 4
  %69 = vst.msk [vmem:[%s68] ss:$8 sm:$0xf] %vm67, %v66
  %s70 = scalar_lea.vmem %s1, 4
  %71 = vst.msk [vmem:[%s70] ss:$8 sm:$0xf0] %vm67, %v66
  %s72 = scalar_lea.vmem %s0, 8
  %v73 = vld [vmem:[%s72] sm:$0xff]
  %74 = vrot.lane.b32.xlu0 %v73, 64
  %v75 = vpop.permute.xlu0 %74
  %vm76 = vcmask 130048
  %s77 = scalar_lea.vmem %s1, 68
  %78 = vst.msk [vmem:[%s77] ss:$8 sm:$0xf] %vm76, %v75
  %s79 = scalar_lea.vmem %s1, 68
  %80 = vst.msk [vmem:[%s79] ss:$8 sm:$0xf0] %vm76, %v75
  %v81 = vld [vmem:[%s0] sm:$0xff]
  %82 = vrot.lane.b32.xlu0 %v81, 48
  %v83 = vpop.permute.xlu0 %82
  %vm84 = vcmask 130048
  %s85 = scalar_lea.vmem %s1, 5
  %86 = vst.msk [vmem:[%s85] ss:$8 sm:$0xf] %vm84, %v83
  %s87 = scalar_lea.vmem %s1, 5
  %88 = vst.msk [vmem:[%s87] ss:$8 sm:$0xf0] %vm84, %v83
  %s89 = scalar_lea.vmem %s0, 8
  %v90 = vld [vmem:[%s89] sm:$0xff]
  %91 = vrot.lane.b32.xlu0 %v90, 48
  %v92 = vpop.permute.xlu0 %91
  %vm93 = vcmask 130048
  %s94 = scalar_lea.vmem %s1, 69
  %95 = vst.msk [vmem:[%s94] ss:$8 sm:$0xf] %vm93, %v92
  %s96 = scalar_lea.vmem %s1, 69
  %97 = vst.msk [vmem:[%s96] ss:$8 sm:$0xf0] %vm93, %v92
  %v98 = vld [vmem:[%s0] sm:$0xff]
  %99 = vrot.lane.b32.xlu0 %v98, 32
  %v100 = vpop.permute.xlu0 %99
  %vm101 = vcmask 130048
  %s102 = scalar_lea.vmem %s1, 6
  %103 = vst.msk [vmem:[%s102] ss:$8 sm:$0xf] %vm101, %v100
  %s104 = scalar_lea.vmem %s1, 6
  %105 = vst.msk [vmem:[%s104] ss:$8 sm:$0xf0] %vm101, %v100
  %s106 = scalar_lea.vmem %s0, 8
  %v107 = vld [vmem:[%s106] sm:$0xff]
  %108 = vrot.lane.b32.xlu0 %v107, 32
  %v109 = vpop.permute.xlu0 %108
  %vm110 = vcmask 130048
  %s111 = scalar_lea.vmem %s1, 70
  %112 = vst.msk [vmem:[%s111] ss:$8 sm:$0xf] %vm110, %v109
  %s113 = scalar_lea.vmem %s1, 70
  %114 = vst.msk [vmem:[%s113] ss:$8 sm:$0xf0] %vm110, %v109
  %v115 = vld [vmem:[%s0] sm:$0xff]
  %116 = vrot.lane.b32.xlu0 %v115, 16
  %v117 = vpop.permute.xlu0 %116
  %vm118 = vcmask 130048
  %s119 = scalar_lea.vmem %s1, 7
  %120 = vst.msk [vmem:[%s119] ss:$8 sm:$0xf] %vm118, %v117
  %s121 = scalar_lea.vmem %s1, 7
  %122 = vst.msk [vmem:[%s121] ss:$8 sm:$0xf0] %vm118, %v117
  %s123 = scalar_lea.vmem %s0, 8
  %v124 = vld [vmem:[%s123] sm:$0xff]
  %125 = vrot.lane.b32.xlu0 %v124, 16
  %v126 = vpop.permute.xlu0 %125
  %vm127 = vcmask 130048
  %s128 = scalar_lea.vmem %s1, 71
  %129 = vst.msk [vmem:[%s128] ss:$8 sm:$0xf] %vm127, %v126
  %s130 = scalar_lea.vmem %s1, 71
  %131 = vst.msk [vmem:[%s130] ss:$8 sm:$0xf0] %vm127, %v126

// kernel: _pallas_impl.2
$region0: #{_pallas_impl.2}
  #allocation0 [shape = 'u32[]', space=smem, size = 0x4, offset = 0x4, fixed_abs, tag = 'smem constant byte address 0x4 - core index']
  #allocation1 [shape = 'u32[144,128]{1,0:T(1,128)}', space=vmem, size = 0x12000, scoped, tag = 'internal scratch']
  #allocation2 [shape = 'u32[2048]{0}', space=vmem, size = 0x2000, scoped, tag = 'scoped memory for _pallas_impl.2']
  #allocation3 [shape = 'u32[2048]{0}', space=vmem, size = 0x2000, scoped, tag = 'scoped memory for _pallas_impl.2']
  #allocation4 [shape = 'u32[2048]{0}', space=vmem, size = 0x2000, scoped, tag = 'scoped memory for _pallas_impl.2']
  #allocation5 [shape = 'u32[2048]{0}', space=vmem, size = 0x2000, scoped, tag = 'scoped memory for _pallas_impl.2']
  #allocation6 [shape = 'u32[2048]{0}', space=vmem, size = 0x2000, scoped, tag = 'scoped memory for _pallas_impl.2']
  #allocation7 [shape = 'u32[2048]{0}', space=vmem, size = 0x2000, scoped, tag = 'scoped memory for _pallas_impl.2']
  #allocation8 [shape = 'u32[2048]{0}', space=vmem, size = 0x2000, scoped, tag = 'scoped memory for _pallas_impl.2']
  #allocation9 [shape = 'u32[2048]{0}', space=vmem, size = 0x2000, scoped, tag = 'scoped memory for _pallas_impl.2']
  #allocation10 [shape = 'u32[2048]{0}', space=vmem, size = 0x2000, scoped, tag = 'scoped memory for _pallas_impl.2']
  #allocation11 [shape = 'u32[2048]{0}', space=vmem, size = 0x2000, scoped, tag = 'scoped memory for _pallas_impl.2']
  %s0 = inlined_call_operand.vmem [shape: f32[1,16,128], index: 0, kind: input, shape index: {}]
  %s1 = inlined_call_operand.<no memory space> [shape: f32[], index: 1, kind: input, shape index: {}]
  %s2 = inlined_call_operand.vmem [shape: f32[1,16,128], index: 2, kind: input, shape index: {}]
  %s3 = inlined_call_operand.vmem [shape: f32[2,16,128], index: 3, kind: output, shape index: {}]
  %s4 = sld [smem:[#allocation0]]
  $region18: #{_pallas_impl.2} parent=0
    _
  %s6 = ssub.s32 1, %s4
  %s7 = scalar_select 0, %s6, %s4
  %v8 = vstv %s1
  %v9 = vstv %s1
  $region1: #{_pallas_impl.2} parent=0
    #allocation12 [shape = 'u8[16384]{0}', space=vmem, size = 0x4000, dematerialized = true, scoped, tag = 'FusionAdapter Buffer %fusion.1 = f32[2,16,128]{2,1,0:T(8,128)} fusion(%param_0.5, %param_1.6, %param_2.2), kind=kLoop, calls=%fused_computation.1.clone, metadata={op_name="jit(_pallas_impl)/concatenate" stack_frame_id=10}']
    // Predicated region
    $region2: #{_pallas_impl.2} parent=1 // pred_check
      _
    $region3: #{_pallas_impl.2} parent=1 // pred_check_branch
      %11 = sbr.rel (0) target = $region5
    $region4: #{_pallas_impl.2} parent=1 // pred_region
      %s13 = ssub.s32 1, 0
      %s14 = smul.u32 128, %s13
      %s15 = smul.u32 %s14, 2
      %p16 = scmp.lt.s32.totalorder 0, 0
      %s17 = scalar_select %p16, 0, 0
      %s18 = smul.addr %s17, 2
      %s19 = smul.addr %s18, 8
      %s20 = scalar_lea.vmem %s0, %s19
      %s22 = ssub.s32 1, 0
      %s23 = smul.u32 128, %s22
      %s24 = smul.u32 %s23, 2
    $region5: #{_pallas_impl.2} parent=1 // pred_fallthru
      _
    // Predicated region
    $region6: #{_pallas_impl.2} parent=1 // pred_check
      _
    $region7: #{_pallas_impl.2} parent=1 // pred_check_branch
      %26 = sbr.rel (0) target = $region9
    $region8: #{_pallas_impl.2} parent=1 // pred_region
      _
    $region9: #{_pallas_impl.2} parent=1 // pred_fallthru
      _
    %s28 = ssub.s32 1, 0
    %s29 = smul.u32 128, %s28
    %s30 = smul.u32 %s29, 2
    %p31 = scmp.lt.s32.totalorder 0, 0
    %s32 = scalar_select %p31, 0, 0
    %s33 = smul.addr %s32, 2
    %s34 = smul.addr %s33, 8
    %s35 = scalar_lea.vmem %s0, %s34
    %s37 = ssub.s32 1, 0
    %s38 = smul.u32 128, %s37
    %s39 = smul.u32 %s38, 2
    %p40 = scmp.lt.s32.totalorder 0, 0
    %s41 = scalar_select %p40, 0, 0
    %s42 = smul.addr %s41, 2
    %s43 = smul.addr %s42, 8
    %s44 = scalar_lea.vmem %s0, %s43
    %s46 = ssub.s32 1, 0
    %s47 = smul.u32 128, %s46
    %s48 = smul.u32 %s47, 2
    %s49 = ssub.s32 0, 0
    %p50 = scmp.lt.s32.totalorder %s49, 0
    %s51 = scalar_select %p50, 0, 255
    %v52 = vld [vmem:[%s44] sm:%s51]
    %v53 = vld [vmem:[%s2] sm:$0xff]
    %54 = xla_tuple %v53, %v8
    %55 = xla_tuple %54
    %v56 = vmax.f32 %v53, %v8
    %57 = xla_tuple %v56
    %59 = vst [vmem:[#allocation12] sm:$0xff] %v56
    %s60 = scalar_lea.vmem %s44, 8
    %s61 = ssub.s32 0, 0
    %p62 = scmp.lt.s32.totalorder %s61, 0
    %s63 = scalar_select %p62, 0, 255
    %v64 = vld [vmem:[%s60] sm:%s63]
    %s65 = scalar_lea.vmem %s2, 8
    %v66 = vld [vmem:[%s65] sm:$0xff]
    %67 = xla_tuple %v66, %v8
    %68 = xla_tuple %67
    %v69 = vmax.f32 %v66, %v8
    %70 = xla_tuple %v69
    %s71 = scalar_lea.vmem [#allocation12], 8
    %73 = vst [vmem:[%s71] sm:$0xff] %v69
    %74 = xla_tuple %v9, %v52
    %75 = xla_tuple %74
    %v76 = vmax.f32 %v9, %v52
    %77 = xla_tuple %v76
    %s78 = scalar_lea.vmem [#allocation12], 16
    %80 = vst [vmem:[%s78] sm:$0xff] %v76
    %s81 = scalar_lea.vmem %s44, 8
    %82 = xla_tuple %v9, %v64
    %83 = xla_tuple %82
    %v84 = vmax.f32 %v9, %v64
    %85 = xla_tuple %v84
    %s86 = scalar_lea.vmem [#allocation12], 24
    %88 = vst [vmem:[%s86] sm:$0xff] %v84
    %v89 = vld [vmem:[#allocation12] sm:$0xff]
    %v90 = vld [vmem:[#allocation12 + $0x8] sm:$0xff]
    %s91 = scalar_lea.vmem [#allocation12], 16
    %v92 = vld [vmem:[%s91] sm:$0xff]
    %v93 = vld [vmem:[%s91 + $0x8] sm:$0xff]
    %vm94 = vcmp.ge.f32.partialorder %v89, 0.0
    %vm95 = vcmp.ge.f32.partialorder %v90, 0.0
    %v96 = vsel %vm94, %v89, 0.0
    %v97 = vsel %vm95, %v90, 0.0
    %v98 = vsel %vm94, %v92, 0.0
    %v99 = vsel %vm95, %v93, 0.0
    %100 = vst [vmem:[%s3] sm:$0xff] %v96
    %101 = vst [vmem:[%s3 + $0x8] sm:$0xff] %v97
    %s102 = scalar_lea.vmem %s3, 16
    %103 = vst [vmem:[%s102] sm:$0xff] %v98
    %104 = vst [vmem:[%s102 + $0x8] sm:$0xff] %v99
    // Predicated region
    $region10: #{_pallas_impl.2} parent=1 // pred_check
      _
    $region11: #{_pallas_impl.2} parent=1 // pred_check_branch
      %106 = sbr.rel (0) target = $region13
    $region12: #{_pallas_impl.2} parent=1 // pred_region
      _
    $region13: #{_pallas_impl.2} parent=1 // pred_fallthru
      _
    // Predicated region
    $region14: #{_pallas_impl.2} parent=1 // pred_check
      _
    $region15: #{_pallas_impl.2} parent=1 // pred_check_branch
      %108 = sbr.rel (0) target = $region17
    $region16: #{_pallas_impl.2} parent=1 // pred_region
      _
    $region17: #{_pallas_impl.2} parent=1 // pred_fallthru
      _

// kernel: custom-call.1
$region0: #{custom-call.1}
  %s0 = inlined_call_operand.hbm [shape: c64[2,4,16,16], index: 0, kind: input, shape index: {}]
  %s1 = inlined_call_operand.vmem [shape: f32[2,4,16,16], index: 1, kind: output, shape index: {}]
  %s2 = scalar_lea.hbm %s0, 2048
  $region1: #{custom-call.1} parent=0
    #allocation0 [shape = 's32[1]{0}', space=sflag, size = 0x4, scoped, tag = 'scoped memory for custom-call.1']
    %3 = vsyncpa [#allocation0], 0
    %s4 = sshll.u32 %s1, 4
    %s5 = int_to_ptr.vmem [resolvable:$true] %s4
    %7 = dma.hbm_to_vmem [thread:$0]  %s2, 2048, %s5, [#allocation0]
    %8 = dma.done [#allocation0], 2048
    %9 = vsyncpa [#allocation0], 1

// kernel: custom-call
$region0: #{custom-call}
  %s0 = inlined_call_operand.hbm [shape: c64[2,4,16,16], index: 0, kind: input, shape index: {}]
  %s1 = inlined_call_operand.vmem [shape: f32[2,4,16,16], index: 1, kind: output, shape index: {}]
  $region1: #{custom-call} parent=0
    #allocation0 [shape = 's32[1]{0}', space=sflag, size = 0x4, scoped, tag = 'scoped memory for custom-call']
    %2 = vsyncpa [#allocation0], 0
    %s3 = sshll.u32 %s1, 4
    %s4 = int_to_ptr.vmem [resolvable:$true] %s3
    %6 = dma.hbm_to_vmem [thread:$0]  %s0, 2048, %s4, [#allocation0]
    %7 = dma.done [#allocation0], 2048
    %8 = vsyncpa [#allocation0], 1

// kernel: custom-call.2
$region0: #{custom-call.2}
  %s0 = inlined_call_operand.vmem [shape: f32[2,4,16,16], index: 0, kind: input, shape index: {}]
  %s1 = inlined_call_operand.vmem [shape: f32[2,4,16,16], index: 1, kind: input, shape index: {}]
  %s2 = inlined_call_operand.hbm [shape: c64[2,4,16,16], index: 2, kind: output, shape index: {}]
  %s3 = scalar_lea.hbm %s2, 2048
  $region1: #{custom-call.2} parent=0
    #allocation0 [shape = 's32[1]{0}', space=sflag, size = 0x4, scoped, tag = 'scoped memory for custom-call.2']
    %4 = vsyncpa [#allocation0], 0
    %s5 = sshll.u32 %s0, 4
    %s6 = int_to_ptr.vmem [resolvable:$true] %s5
    %8 = dma.vmem_to_hbm [thread:$0]  %s6, 2048, %s2, [#allocation0]
    %9 = dma.done [#allocation0], 2048
    %10 = vsyncpa [#allocation0], 1
  $region2: #{custom-call.2} parent=0
    #allocation1 [shape = 's32[1]{0}', space=sflag, size = 0x4, scoped, tag = 'scoped memory for custom-call.2']
    %11 = vsyncpa [#allocation1], 0
    %s12 = sshll.u32 %s1, 4
    %s13 = int_to_ptr.vmem [resolvable:$true] %s12
    %15 = dma.vmem_to_hbm [thread:$0]  %s13, 2048, %s3, [#allocation1]
    %16 = dma.done [#allocation1], 2048
    %17 = vsyncpa [#allocation1], 1

// kernel: squeeze.3
$region0: #{squeeze.3}
  %s0 = inlined_call_operand.vmem [shape: f32[1,16,128], index: 0, kind: input, shape index: {}]
  %s1 = inlined_call_operand.vmem [shape: f32[2,4,16,16], index: 1, kind: output, shape index: {}]
  %v2 = vld [vmem:[%s0] sm:$0xff]
  %vm3 = vcmask 130048
  %4 = vst.msk [vmem:[%s1] ss:$8 sm:$0xf] %vm3, %v2
  %5 = vst.msk [vmem:[%s1] ss:$8 sm:$0xf0] %vm3, %v2
  %s6 = scalar_lea.vmem %s0, 8
  %v7 = vld [vmem:[%s6] sm:$0xff]
  %vm8 = vcmask 130048
  %s9 = scalar_lea.vmem %s1, 64
  %10 = vst.msk [vmem:[%s9] ss:$8 sm:$0xf] %vm8, %v7
  %s11 = scalar_lea.vmem %s1, 64
  %12 = vst.msk [vmem:[%s11] ss:$8 sm:$0xf0] %vm8, %v7
  %v13 = vld [vmem:[%s0] sm:$0xff]
  %14 = vrot.lane.b32.xlu0 %v13, 112
  %v15 = vpop.permute.xlu0 %14
  %vm16 = vcmask 130048
  %s17 = scalar_lea.vmem %s1, 1
  %18 = vst.msk [vmem:[%s17] ss:$8 sm:$0xf] %vm16, %v15
  %s19 = scalar_lea.vmem %s1, 1
  %20 = vst.msk [vmem:[%s19] ss:$8 sm:$0xf0] %vm16, %v15
  %s21 = scalar_lea.vmem %s0, 8
  %v22 = vld [vmem:[%s21] sm:$0xff]
  %23 = vrot.lane.b32.xlu0 %v22, 112
  %v24 = vpop.permute.xlu0 %23
  %vm25 = vcmask 130048
  %s26 = scalar_lea.vmem %s1, 65
  %27 = vst.msk [vmem:[%s26] ss:$8 sm:$0xf] %vm25, %v24
  %s28 = scalar_lea.vmem %s1, 65
  %29 = vst.msk [vmem:[%s28] ss:$8 sm:$0xf0] %vm25, %v24
  %v30 = vld [vmem:[%s0] sm:$0xff]
  %31 = vrot.lane.b32.xlu0 %v30, 96
  %v32 = vpop.permute.xlu0 %31
  %vm33 = vcmask 130048
  %s34 = scalar_lea.vmem %s1, 2
  %35 = vst.msk [vmem:[%s34] ss:$8 sm:$0xf] %vm33, %v32
  %s36 = scalar_lea.vmem %s1, 2
  %37 = vst.msk [vmem:[%s36] ss:$8 sm:$0xf0] %vm33, %v32
  %s38 = scalar_lea.vmem %s0, 8
  %v39 = vld [vmem:[%s38] sm:$0xff]
  %40 = vrot.lane.b32.xlu0 %v39, 96
  %v41 = vpop.permute.xlu0 %40
  %vm42 = vcmask 130048
  %s43 = scalar_lea.vmem %s1, 66
  %44 = vst.msk [vmem:[%s43] ss:$8 sm:$0xf] %vm42, %v41
  %s45 = scalar_lea.vmem %s1, 66
  %46 = vst.msk [vmem:[%s45] ss:$8 sm:$0xf0] %vm42, %v41
  %v47 = vld [vmem:[%s0] sm:$0xff]
  %48 = vrot.lane.b32.xlu0 %v47, 80
  %v49 = vpop.permute.xlu0 %48
  %vm50 = vcmask 130048
  %s51 = scalar_lea.vmem %s1, 3
  %52 = vst.msk [vmem:[%s51] ss:$8 sm:$0xf] %vm50, %v49
  %s53 = scalar_lea.vmem %s1, 3
  %54 = vst.msk [vmem:[%s53] ss:$8 sm:$0xf0] %vm50, %v49
  %s55 = scalar_lea.vmem %s0, 8
  %v56 = vld [vmem:[%s55] sm:$0xff]
  %57 = vrot.lane.b32.xlu0 %v56, 80
  %v58 = vpop.permute.xlu0 %57
  %vm59 = vcmask 130048
  %s60 = scalar_lea.vmem %s1, 67
  %61 = vst.msk [vmem:[%s60] ss:$8 sm:$0xf] %vm59, %v58
  %s62 = scalar_lea.vmem %s1, 67
  %63 = vst.msk [vmem:[%s62] ss:$8 sm:$0xf0] %vm59, %v58
  %v64 = vld [vmem:[%s0] sm:$0xff]
  %65 = vrot.lane.b32.xlu0 %v64, 64
  %v66 = vpop.permute.xlu0 %65
  %vm67 = vcmask 130048
  %s68 = scalar_lea.vmem %s1, 4
  %69 = vst.msk [vmem:[%s68] ss:$8 sm:$0xf] %vm67, %v66
  %s70 = scalar_lea.vmem %s1, 4
  %71 = vst.msk [vmem:[%s70] ss:$8 sm:$0xf0] %vm67, %v66
  %s72 = scalar_lea.vmem %s0, 8
  %v73 = vld [vmem:[%s72] sm:$0xff]
  %74 = vrot.lane.b32.xlu0 %v73, 64
  %v75 = vpop.permute.xlu0 %74
  %vm76 = vcmask 130048
  %s77 = scalar_lea.vmem %s1, 68
  %78 = vst.msk [vmem:[%s77] ss:$8 sm:$0xf] %vm76, %v75
  %s79 = scalar_lea.vmem %s1, 68
  %80 = vst.msk [vmem:[%s79] ss:$8 sm:$0xf0] %vm76, %v75
  %v81 = vld [vmem:[%s0] sm:$0xff]
  %82 = vrot.lane.b32.xlu0 %v81, 48
  %v83 = vpop.permute.xlu0 %82
  %vm84 = vcmask 130048
  %s85 = scalar_lea.vmem %s1, 5
  %86 = vst.msk [vmem:[%s85] ss:$8 sm:$0xf] %vm84, %v83
  %s87 = scalar_lea.vmem %s1, 5
  %88 = vst.msk [vmem:[%s87] ss:$8 sm:$0xf0] %vm84, %v83
  %s89 = scalar_lea.vmem %s0, 8
  %v90 = vld [vmem:[%s89] sm:$0xff]
  %91 = vrot.lane.b32.xlu0 %v90, 48
  %v92 = vpop.permute.xlu0 %91
  %vm93 = vcmask 130048
  %s94 = scalar_lea.vmem %s1, 69
  %95 = vst.msk [vmem:[%s94] ss:$8 sm:$0xf] %vm93, %v92
  %s96 = scalar_lea.vmem %s1, 69
  %97 = vst.msk [vmem:[%s96] ss:$8 sm:$0xf0] %vm93, %v92
  %v98 = vld [vmem:[%s0] sm:$0xff]
  %99 = vrot.lane.b32.xlu0 %v98, 32
  %v100 = vpop.permute.xlu0 %99
  %vm101 = vcmask 130048
  %s102 = scalar_lea.vmem %s1, 6
  %103 = vst.msk [vmem:[%s102] ss:$8 sm:$0xf] %vm101, %v100
  %s104 = scalar_lea.vmem %s1, 6
  %105 = vst.msk [vmem:[%s104] ss:$8 sm:$0xf0] %vm101, %v100
  %s106 = scalar_lea.vmem %s0, 8
  %v107 = vld [vmem:[%s106] sm:$0xff]
  %108 = vrot.lane.b32.xlu0 %v107, 32
  %v109 = vpop.permute.xlu0 %108
  %vm110 = vcmask 130048
  %s111 = scalar_lea.vmem %s1, 70
  %112 = vst.msk [vmem:[%s111] ss:$8 sm:$0xf] %vm110, %v109
  %s113 = scalar_lea.vmem %s1, 70
  %114 = vst.msk [vmem:[%s113] ss:$8 sm:$0xf0] %vm110, %v109
  %v115 = vld [vmem:[%s0] sm:$0xff]
  %116 = vrot.lane.b32.xlu0 %v115, 16
  %v117 = vpop.permute.xlu0 %116
  %vm118 = vcmask 130048
  %s119 = scalar_lea.vmem %s1, 7
  %120 = vst.msk [vmem:[%s119] ss:$8 sm:$0xf] %vm118, %v117
  %s121 = scalar_lea.vmem %s1, 7
  %122 = vst.msk [vmem:[%s121] ss:$8 sm:$0xf0] %vm118, %v117
  %s123 = scalar_lea.vmem %s0, 8
  %v124 = vld [vmem:[%s123] sm:$0xff]
  %125 = vrot.lane.b32.xlu0 %v124, 16
  %v126 = vpop.permute.xlu0 %125
  %vm127 = vcmask 130048
  %s128 = scalar_lea.vmem %s1, 71
  %129 = vst.msk [vmem:[%s128] ss:$8 sm:$0xf] %vm127, %v126
  %s130 = scalar_lea.vmem %s1, 71
  %131 = vst.msk [vmem:[%s130] ss:$8 sm:$0xf0] %vm127, %v126

// kernel: _pallas_impl.1
$region0: #{_pallas_impl.1}
  #allocation0 [shape = 'u32[]', space=smem, size = 0x4, offset = 0x4, fixed_abs, tag = 'smem constant byte address 0x4 - core index']
  #allocation1 [shape = 'u32[144,128]{1,0:T(1,128)}', space=vmem, size = 0x12000, scoped, tag = 'internal scratch']
  %s0 = inlined_call_operand.vmem [shape: f32[2,16,128], index: 0, kind: input, shape index: {}, may-alias: {0,1}]
  %s1 = inlined_call_operand.vmem [shape: f32[2,16,128], index: 1, kind: output, shape index: {}, may-alias: {0,1}]
  %s2 = sld [smem:[#allocation0]]
  $region14: #{_pallas_impl.1} parent=0
    _
  %s4 = ssub.s32 1, %s2
  %s5 = scalar_select 0, %s4, %s2
  // Predicated region
  $region2: #{_pallas_impl.1} parent=0 // pred_check
    _
  $region3: #{_pallas_impl.1} parent=0 // pred_check_branch
    %7 = sbr.rel (0) target = $region5
  $region4: #{_pallas_impl.1} parent=0 // pred_region
    _
  $region5: #{_pallas_impl.1} parent=0 // pred_fallthru
    _
  %v8 = vld [vmem:[%s0] sm:$0xff]
  %v9 = vld [vmem:[%s0 + $0x8] sm:$0xff]
  %s10 = scalar_lea.vmem %s0, 16
  %v11 = vld [vmem:[%s10] sm:$0xff]
  %v12 = vld [vmem:[%s10 + $0x8] sm:$0xff]
  %vm13 = vcmp.ge.f32.partialorder %v8, 0.0
  %vm14 = vcmp.ge.f32.partialorder %v9, 0.0
  %v15 = vsel %vm13, %v8, 0.0
  %v16 = vsel %vm14, %v9, 0.0
  %v17 = vsel %vm13, %v11, 0.0
  %v18 = vsel %vm14, %v12, 0.0
  %19 = vst [vmem:[%s1] sm:$0xff] %v15
  %20 = vst [vmem:[%s1 + $0x8] sm:$0xff] %v16
  %s21 = scalar_lea.vmem %s1, 16
  %22 = vst [vmem:[%s21] sm:$0xff] %v17
  %23 = vst [vmem:[%s21 + $0x8] sm:$0xff] %v18
  // Predicated region
  $region6: #{_pallas_impl.1} parent=0 // pred_check
    _
  $region7: #{_pallas_impl.1} parent=0 // pred_check_branch
    %25 = sbr.rel (0) target = $region9
  $region8: #{_pallas_impl.1} parent=0 // pred_region
    _
  $region9: #{_pallas_impl.1} parent=0 // pred_fallthru
    _
  // Predicated region
  $region10: #{_pallas_impl.1} parent=0 // pred_check
    _
  $region11: #{_pallas_impl.1} parent=0 // pred_check_branch
    %27 = sbr.rel (0) target = $region13
  $region12: #{_pallas_impl.1} parent=0 // pred_region
    _
  $region13: #{_pallas_impl.1} parent=0 // pred_fallthru
    _

</llo_original>
